<compile_context>
chip_gen: v7x
topology: tpu7x:2x2x1
jax: 0.10.0
libtpu: 0.0.40
codegen_flags: <defaults>
</compile_context>

<pallas_src>
import functools

import jax
import jax.numpy as jnp
from jax import lax
from jax.experimental import pallas as pl
from jax.experimental.pallas import tpu as pltpu


def _ortho_tile_kernel(ti_ref, tj_ref, mi_ref, mj_ref, num_ref,
                       acc_sc, corr_sc, *, mxu_bf16):
    """One (batch, i-tile, j-tile) grid step of the masked orthogonal loss."""
    i = pl.program_id(1)
    j = pl.program_id(2)
    ni = pl.num_programs(1)
    nj = pl.num_programs(2)

    # Reset the per-batch accumulators at the first tile of every batch.
    @pl.when(jnp.logical_and(i == 0, j == 0))
    def _reset():
        acc_sc[...] = jnp.zeros_like(acc_sc)
        corr_sc[...] = jnp.zeros_like(corr_sc)

    ti = ti_ref[0].astype(jnp.float32)          # (TI, D)
    tj = tj_ref[0].astype(jnp.float32)          # (TJ, D)
    mi = mi_ref[0].astype(jnp.float32)          # (TI, 1)
    mj = mj_ref[0].astype(jnp.float32)          # (TJ, 1)

    # Row l2-normalization with the mask folded into the scale, so the MXU
    # directly produces cos * (m_i * m_j).
    def _masked_normalize(t, m):
        nrm = jnp.sqrt(jnp.sum(t * t, axis=-1, keepdims=True))
        return t * (m / jnp.maximum(nrm, 1e-12))

    nmi = _masked_normalize(ti, mi)
    nmj = _masked_normalize(tj, mj)

    if mxu_bf16:
        ai = nmi.astype(jnp.bfloat16)
        aj = nmj.astype(jnp.bfloat16)
    else:
        ai = nmi
        aj = nmj

    # (TI, TJ) masked Gram tile on the MXU, f32 accumulation.  Contract the
    # last dims directly (no explicit transpose).
    g = lax.dot_general(
        ai, aj,
        dimension_numbers=(((1,), (1,)), ((), ())),
        preferred_element_type=jnp.float32,
    )

    # Pure elementwise (VPU) accumulation; collapsed to a scalar only once
    # per batch at the flush below.
    acc_sc[...] += g * g

    # Analytic identity handling — only diagonal tiles need a correction:
    #   sum((G - diag(m^2))^2) = sum(G^2) - 2*sum_i(G_ii*m_i^2) + sum_i(m_i^4)
    # G_ii == ||nm_i||^2 is recomputed from the (possibly bf16-rounded)
    # operand, so it matches the MXU diagonal to accumulation-order precision.
    @pl.when(i == j)
    def _diag_correction():
        af = ai.astype(jnp.float32)
        d = jnp.sum(af * af, axis=-1, keepdims=True)      # (TI, 1) ~ diag(G)
        m2v = mi * mi
        corr_sc[...] += m2v * m2v - 2.0 * d * m2v

    # Flush the per-batch partial numerator at this batch's last tile.
    @pl.when(jnp.logical_and(i == ni - 1, j == nj - 1))
    def _flush():
        total = jnp.sum(acc_sc[...]) + jnp.sum(corr_sc[...])
        num_ref[...] = total.reshape(1, 1, 1)


def _pick_tile(n, max_tile):
    """Largest multiple-of-8 divisor of n that is <= max_tile (else n)."""
    if n <= max_tile:
        return n
    for cand in range(max_tile, 7, -8):        # max_tile must be a mult. of 8
        if n % cand == 0:
            return cand
    return n


def orthogonal_loss_pallas(t, mask=None, weight=1.0, *,
                           block_n=128, mxu_bf16=True):
    """Pallas equivalent of orthoginal_loss(weight).forward(t, mask)."""
    B, N, D = t.shape
    if mask is None:
        mask = jnp.ones((B, N), dtype=jnp.float32)
    maskf = mask.astype(jnp.float32)
    m3 = maskf.reshape(B, N, 1)

    tile = _pick_tile(N, block_n)
    n_tiles = N // tile

    kernel = functools.partial(_ortho_tile_kernel, mxu_bf16=mxu_bf16)
    num_parts = pl.pallas_call(
        kernel,
        out_shape=jax.ShapeDtypeStruct((B, 1, 1), jnp.float32),
        grid_spec=pltpu.PrefetchScalarGridSpec(
            num_scalar_prefetch=0,
            grid=(B, n_tiles, n_tiles),
            in_specs=[
                pl.BlockSpec((1, tile, D), lambda b, i, j: (b, i, 0)),  # row tile
                pl.BlockSpec((1, tile, D), lambda b, i, j: (b, j, 0)),  # col tile
                pl.BlockSpec((1, tile, 1), lambda b, i, j: (b, i, 0)),  # row mask
                pl.BlockSpec((1, tile, 1), lambda b, i, j: (b, j, 0)),  # col mask
            ],
            out_specs=pl.BlockSpec((1, 1, 1), lambda b, i, j: (b, 0, 0)),
            scratch_shapes=[
                pltpu.VMEM((tile, tile), jnp.float32),   # sum(G^2) partials
                pltpu.VMEM((tile, 1), jnp.float32),      # diagonal corrections
            ],
        ),
        compiler_params=pltpu.CompilerParams(
            dimension_semantics=("parallel", "arbitrary", "arbitrary"),
        ),
    )(t, t, m3, m3)

    num = jnp.sum(num_parts)
    # sum(m2) for the rank-1 pair mask is (sum m)^2 per batch.  O(B*N), cheap.
    # NOTE: an all-zero mask divides by zero — same behavior as the reference.
    den = jnp.sum(jnp.sum(maskf, axis=1) ** 2)
    return (num / den) * weight


def orthogonal_loss_ref(t, mask=None, weight=1.0):
    """Pure-JAX reference of the padded orthogonal-loss semantics."""
    B, N, D = t.shape
    if mask is None:
        mask = jnp.ones((B, N), dtype=jnp.float32)
    mask = mask.astype(jnp.float32)
    nrm = jnp.sqrt(jnp.sum(t * t, axis=-1, keepdims=True))
    normed = t / jnp.maximum(nrm, 1e-12)
    cos = jnp.einsum('bid,bjd->bij', normed, normed,
                     precision=lax.Precision.HIGHEST)
    ident = jnp.eye(N, dtype=jnp.float32)[None]
    m2 = mask[:, :, None] * mask[:, None, :]
    diff = (cos - ident) * m2
    return (jnp.sum(diff * diff) / jnp.sum(m2)) * weight


# TODO(synk): the exact source of `orthogonal_loss_fn_padded` was not included
# with the module; the masked cosine-Gram-vs-identity MSE above is the assumed
# semantics (standard padded orthogonal regularizer).

if __name__ == "__main__":
    key = jax.random.PRNGKey(0)
    k1, k2 = jax.random.split(key)

    # Case 1: module-scale tiny shapes (B=2, N=8 codes, D=32), padded batch 1.
    B, N, D = 2, 8, 32
    t_small = jax.random.normal(k1, (B, N, D), dtype=jnp.float32)
    lengths = jnp.array([8, 5], dtype=jnp.int32)
    mask_small = (jnp.arange(N)[None, :] < lengths[:, None]).astype(jnp.float32)

    # Case 2: exercises the 128-wide Gram tiling path (grid = (2, 2, 2)).
    B2, N2, D2 = 2, 256, 64
    t_big = jax.random.normal(k2, (B2, N2, D2), dtype=jnp.float32)
    lengths2 = jnp.array([256, 173], dtype=jnp.int32)
    mask_big = (jnp.arange(N2)[None, :] < lengths2[:, None]).astype(jnp.float32)

    weight = 1.0  # module default
    cases = [
        (t_small, mask_small),
        (t_small, None),
        (t_big, mask_big),
    ]
    for tc, mc in cases:
        ref = orthogonal_loss_ref(tc, mc, weight=weight)

        out_bf16 = jax.block_until_ready(
            orthogonal_loss_pallas(tc, mc, weight=weight, mxu_bf16=True))
        assert jnp.allclose(out_bf16, ref, rtol=3e-2, atol=1e-4), (out_bf16, ref)

        out_f32 = jax.block_until_ready(
            orthogonal_loss_pallas(tc, mc, weight=weight, mxu_bf16=False))
        assert jnp.allclose(out_f32, ref, rtol=1e-3, atol=1e-6), (out_f32, ref)

    print("KERNEL_OK")
</pallas_src>

<mosaic_0001>
module attributes {stable_mosaic.version = 11 : i64} {
  func.func @_ortho_tile_kernel(%arg0: i32, %arg1: i32, %arg2: i32, %arg3: memref<1x8x32xf32, #tpu.memory_space<vmem>>, %arg4: memref<1x8x32xf32, #tpu.memory_space<vmem>>, %arg5: memref<1x8x1xf32, #tpu.memory_space<vmem>>, %arg6: memref<1x8x1xf32, #tpu.memory_space<vmem>>, %arg7: memref<1x1x1xf32, #tpu.memory_space<vmem>>, %arg8: memref<8x8xf32, #tpu.memory_space<vmem>>, %arg9: memref<8x1xf32, #tpu.memory_space<vmem>>) attributes {dimension_semantics = [#tpu.dimension_semantics<parallel>, #tpu.dimension_semantics<arbitrary>, #tpu.dimension_semantics<arbitrary>], iteration_bounds = array<i64: 2, 1, 1>, scalar_prefetch = 0 : i64, scratch_operands = 2 : i64, tpu.core_type = #tpu.core_type<tc>, window_params = [{transform_indices = @transform_0, window_bounds = array<i64: 1, 8, 32>}, {transform_indices = @transform_1, window_bounds = array<i64: 1, 8, 32>}, {transform_indices = @transform_2, window_bounds = array<i64: 1, 8, 1>}, {transform_indices = @transform_3, window_bounds = array<i64: 1, 8, 1>}, {transform_indices = @transform_4, window_bounds = array<i64: 1, 1, 1>}]} {
    %c0_i32 = arith.constant 0 : i32
    %0 = arith.cmpi eq, %arg1, %c0_i32 : i32
    %c0_i32_0 = arith.constant 0 : i32
    %1 = arith.cmpi eq, %arg2, %c0_i32_0 : i32
    %2 = arith.andi %0, %1 : i1
    %3 = arith.extui %2 : i1 to i32
    %c0_i32_1 = arith.constant 0 : i32
    %4 = arith.cmpi ne, %3, %c0_i32_1 : i32
    scf.if %4 {
      %cst_25 = arith.constant 0.000000e+00 : f32
      %46 = vector.broadcast %cst_25 : f32 to vector<8x8xf32>
      %c0_26 = arith.constant 0 : index
      %c0_27 = arith.constant 0 : index
      %47 = vector.load %arg8[%c0_26, %c0_27] : memref<8x8xf32, #tpu.memory_space<vmem>>, vector<8x8xf32>
      tpu.vector_store %arg8[%c0_26, %c0_27], %46 {strides = array<i32>} : memref<8x8xf32, #tpu.memory_space<vmem>>, vector<8x8xf32>,
      %cst_28 = arith.constant 0.000000e+00 : f32
      %48 = vector.broadcast %cst_28 : f32 to vector<8x1xf32>
      %c0_29 = arith.constant 0 : index
      %c0_30 = arith.constant 0 : index
      %49 = vector.load %arg9[%c0_29, %c0_30] : memref<8x1xf32, #tpu.memory_space<vmem>>, vector<8x1xf32>
      tpu.vector_store %arg9[%c0_29, %c0_30], %48 {strides = array<i32>} : memref<8x1xf32, #tpu.memory_space<vmem>>, vector<8x1xf32>,
    } else {
    }
    %c0 = arith.constant 0 : index
    %c0_2 = arith.constant 0 : index
    %c0_3 = arith.constant 0 : index
    %5 = vector.load %arg3[%c0, %c0_2, %c0_3] : memref<1x8x32xf32, #tpu.memory_space<vmem>>, vector<1x8x32xf32>
    %6 = vector.shape_cast %5 : vector<1x8x32xf32> to vector<8x32xf32>
    %c0_4 = arith.constant 0 : index
    %c0_5 = arith.constant 0 : index
    %c0_6 = arith.constant 0 : index
    %7 = vector.load %arg4[%c0_4, %c0_5, %c0_6] : memref<1x8x32xf32, #tpu.memory_space<vmem>>, vector<1x8x32xf32>
    %8 = vector.shape_cast %7 : vector<1x8x32xf32> to vector<8x32xf32>
    %c0_7 = arith.constant 0 : index
    %c0_8 = arith.constant 0 : index
    %c0_9 = arith.constant 0 : index
    %9 = vector.load %arg5[%c0_7, %c0_8, %c0_9] : memref<1x8x1xf32, #tpu.memory_space<vmem>>, vector<1x8x1xf32>
    %10 = vector.shape_cast %9 : vector<1x8x1xf32> to vector<8x1xf32>
    %c0_10 = arith.constant 0 : index
    %c0_11 = arith.constant 0 : index
    %c0_12 = arith.constant 0 : index
    %11 = vector.load %arg6[%c0_10, %c0_11, %c0_12] : memref<1x8x1xf32, #tpu.memory_space<vmem>>, vector<1x8x1xf32>
    %12 = vector.shape_cast %11 : vector<1x8x1xf32> to vector<8x1xf32>
    %13 = arith.mulf %6, %6 : vector<8x32xf32>
    %cst = arith.constant dense<0.000000e+00> : vector<8xf32>
    %14 = vector.multi_reduction <add>, %13, %cst [1] : vector<8x32xf32> to vector<8xf32>
    %15 = vector.shape_cast %14 : vector<8xf32> to vector<8x1xf32>
    %16 = math.sqrt %15 : vector<8x1xf32>
    %cst_13 = arith.constant 9.99999996E-13 : f32
    %17 = vector.broadcast %cst_13 : f32 to vector<8x1xf32>
    %18 = arith.maximumf %16, %17 : vector<8x1xf32>
    %19 = arith.divf %10, %18 : vector<8x1xf32>
    %20 = vector.broadcast %19 : vector<8x1xf32> to vector<8x32xf32>
    %21 = arith.mulf %6, %20 : vector<8x32xf32>
    %22 = arith.mulf %8, %8 : vector<8x32xf32>
    %cst_14 = arith.constant dense<0.000000e+00> : vector<8xf32>
    %23 = vector.multi_reduction <add>, %22, %cst_14 [1] : vector<8x32xf32> to vector<8xf32>
    %24 = vector.shape_cast %23 : vector<8xf32> to vector<8x1xf32>
    %25 = math.sqrt %24 : vector<8x1xf32>
    %cst_15 = arith.constant 9.99999996E-13 : f32
    %26 = vector.broadcast %cst_15 : f32 to vector<8x1xf32>
    %27 = arith.maximumf %25, %26 : vector<8x1xf32>
    %28 = arith.divf %12, %27 : vector<8x1xf32>
    %29 = vector.broadcast %28 : vector<8x1xf32> to vector<8x32xf32>
    %30 = arith.mulf %8, %29 : vector<8x32xf32>
    %31 = arith.truncf %21 : vector<8x32xf32> to vector<8x32xbf16>
    %32 = arith.truncf %30 : vector<8x32xf32> to vector<8x32xbf16>
    %cst_16 = arith.constant dense<0.000000e+00> : vector<8x8xf32>
    %33 = tpu.matmul %31, %32, %cst_16 {dimension_numbers = #tpu.dot_dimension_numbers<[1], [1], [0], [0], [0, 0, 1, 0], [], []>} : vector<8x32xbf16>, vector<8x32xbf16>, vector<8x8xf32> -> vector<8x8xf32>
    %c0_17 = arith.constant 0 : index
    %c0_18 = arith.constant 0 : index
    %34 = vector.load %arg8[%c0_17, %c0_18] : memref<8x8xf32, #tpu.memory_space<vmem>>, vector<8x8xf32>
    %35 = arith.mulf %33, %33 : vector<8x8xf32>
    %36 = arith.addf %34, %35 : vector<8x8xf32>
    %c0_19 = arith.constant 0 : index
    %c0_20 = arith.constant 0 : index
    %37 = vector.load %arg8[%c0_19, %c0_20] : memref<8x8xf32, #tpu.memory_space<vmem>>, vector<8x8xf32>
    tpu.vector_store %arg8[%c0_19, %c0_20], %36 {strides = array<i32>} : memref<8x8xf32, #tpu.memory_space<vmem>>, vector<8x8xf32>,
    %38 = arith.cmpi eq, %arg1, %arg2 : i32
    %39 = arith.extui %38 : i1 to i32
    %c0_i32_21 = arith.constant 0 : i32
    %40 = arith.cmpi ne, %39, %c0_i32_21 : i32
    scf.if %40 {
      %46 = arith.extf %31 : vector<8x32xbf16> to vector<8x32xf32>
      %47 = arith.mulf %46, %46 : vector<8x32xf32>
      %cst_25 = arith.constant dense<0.000000e+00> : vector<8xf32>
      %48 = vector.multi_reduction <add>, %47, %cst_25 [1] : vector<8x32xf32> to vector<8xf32>
      %49 = vector.shape_cast %48 : vector<8xf32> to vector<8x1xf32>
      %50 = arith.mulf %10, %10 : vector<8x1xf32>
      %c0_26 = arith.constant 0 : index
      %c0_27 = arith.constant 0 : index
      %51 = vector.load %arg9[%c0_26, %c0_27] : memref<8x1xf32, #tpu.memory_space<vmem>>, vector<8x1xf32>
      %52 = arith.mulf %50, %50 : vector<8x1xf32>
      %cst_28 = arith.constant 2.000000e+00 : f32
      %53 = vector.broadcast %cst_28 : f32 to vector<8x1xf32>
      %54 = arith.mulf %53, %49 : vector<8x1xf32>
      %55 = arith.mulf %54, %50 : vector<8x1xf32>
      %56 = arith.subf %52, %55 : vector<8x1xf32>
      %57 = arith.addf %51, %56 : vector<8x1xf32>
      %c0_29 = arith.constant 0 : index
      %c0_30 = arith.constant 0 : index
      %58 = vector.load %arg9[%c0_29, %c0_30] : memref<8x1xf32, #tpu.memory_space<vmem>>, vector<8x1xf32>
      tpu.vector_store %arg9[%c0_29, %c0_30], %57 {strides = array<i32>} : memref<8x1xf32, #tpu.memory_space<vmem>>, vector<8x1xf32>,
    } else {
    }
    %c0_i32_22 = arith.constant 0 : i32
    %41 = arith.cmpi eq, %arg1, %c0_i32_22 : i32
    %c0_i32_23 = arith.constant 0 : i32
    %42 = arith.cmpi eq, %arg2, %c0_i32_23 : i32
    %43 = arith.andi %41, %42 : i1
    %44 = arith.extui %43 : i1 to i32
    %c0_i32_24 = arith.constant 0 : i32
    %45 = arith.cmpi ne, %44, %c0_i32_24 : i32
    scf.if %45 {
      %c0_25 = arith.constant 0 : index
      %c0_26 = arith.constant 0 : index
      %46 = vector.load %arg8[%c0_25, %c0_26] : memref<8x8xf32, #tpu.memory_space<vmem>>, vector<8x8xf32>
      %47 = vector.shape_cast %46 : vector<8x8xf32> to vector<1x8x8xf32>
      %cst_27 = arith.constant dense<0.000000e+00> : vector<1xf32>
      %48 = vector.multi_reduction <add>, %47, %cst_27 [1, 2] : vector<1x8x8xf32> to vector<1xf32>
      %49 = vector.shape_cast %48 : vector<1xf32> to vector<1x1x1xf32>
      %50 = vector.extract %49[0, 0, 0] : f32 from vector<1x1x1xf32>
      %c0_28 = arith.constant 0 : index
      %c0_29 = arith.constant 0 : index
      %51 = vector.load %arg9[%c0_28, %c0_29] : memref<8x1xf32, #tpu.memory_space<vmem>>, vector<8x1xf32>
      %52 = vector.shape_cast %51 : vector<8x1xf32> to vector<1x8x1xf32>
      %cst_30 = arith.constant dense<0.000000e+00> : vector<1xf32>
      %53 = vector.multi_reduction <add>, %52, %cst_30 [1, 2] : vector<1x8x1xf32> to vector<1xf32>
      %54 = vector.shape_cast %53 : vector<1xf32> to vector<1x1x1xf32>
      %55 = vector.extract %54[0, 0, 0] : f32 from vector<1x1x1xf32>
      %56 = arith.addf %50, %55 : f32
      %57 = vector.broadcast %56 : f32 to vector<1x1x1xf32>
      %c0_31 = arith.constant 0 : index
      %c0_32 = arith.constant 0 : index
      %c0_33 = arith.constant 0 : index
      %58 = vector.load %arg7[%c0_31, %c0_32, %c0_33] : memref<1x1x1xf32, #tpu.memory_space<vmem>>, vector<1x1x1xf32>
      tpu.vector_store %arg7[%c0_31, %c0_32, %c0_33], %57 {strides = array<i32>} : memref<1x1x1xf32, #tpu.memory_space<vmem>>, vector<1x1x1xf32>,
    } else {
    }
    return
  }
  func.func @transform_0(%arg0: i32, %arg1: i32, %arg2: i32) -> (i32, i32, i32) {
    %c0_i32 = arith.constant 0 : i32
    %c0_i32_0 = arith.constant 0 : i32
    return %arg0, %arg1, %c0_i32 : i32, i32, i32
  }
  func.func @transform_1(%arg0: i32, %arg1: i32, %arg2: i32) -> (i32, i32, i32) {
    %c0_i32 = arith.constant 0 : i32
    %c0_i32_0 = arith.constant 0 : i32
    return %arg0, %arg2, %c0_i32 : i32, i32, i32
  }
  func.func @transform_2(%arg0: i32, %arg1: i32, %arg2: i32) -> (i32, i32, i32) {
    %c0_i32 = arith.constant 0 : i32
    %c0_i32_0 = arith.constant 0 : i32
    return %arg0, %arg1, %c0_i32 : i32, i32, i32
  }
  func.func @transform_3(%arg0: i32, %arg1: i32, %arg2: i32) -> (i32, i32, i32) {
    %c0_i32 = arith.constant 0 : i32
    %c0_i32_0 = arith.constant 0 : i32
    return %arg0, %arg2, %c0_i32 : i32, i32, i32
  }
  func.func @transform_4(%arg0: i32, %arg1: i32, %arg2: i32) -> (i32, i32, i32) {
    %c0_i32 = arith.constant 0 : i32
    %c0_i32_0 = arith.constant 0 : i32
    %c0_i32_1 = arith.constant 0 : i32
    return %arg0, %c0_i32, %c0_i32_0 : i32, i32, i32
  }
}

</mosaic_0001>

<llo_original>
// kernel: tpu_custom_call.1
$region0: #{tpu_custom_call.1}
  #allocation0 [shape = 'u32[]', space=smem, size = 0x4, offset = 0x4, fixed_abs, tag = 'smem constant byte address 0x4 - core index']
  #allocation1 [shape = 'u32[144,128]{1,0:T(1,128)}', space=vmem, size = 0x12000, scoped, tag = 'internal scratch']
  #allocation2 [shape = 'f32[8,8]{1,0:T(8,128)}', space=vmem, size = 0x1000, scoped, tag = 'scratch operand']
  #allocation3 [shape = 'f32[8,1]{1,0:T(8,128)}', space=vmem, size = 0x1000, scoped, tag = 'scratch operand']
  %s0 = inlined_call_operand.vmem [shape: f32[2,8,32], index: 0, kind: input, shape index: {}]
  %s1 = inlined_call_operand.vmem [shape: f32[2,8,32], index: 1, kind: input, shape index: {}]
  %s2 = inlined_call_operand.vmem [shape: f32[2,8,1], index: 2, kind: input, shape index: {}]
  %s3 = inlined_call_operand.vmem [shape: f32[2,8,1], index: 3, kind: input, shape index: {}]
  %s4 = inlined_call_operand.vmem [shape: f32[2,1,1], index: 4, kind: output, shape index: {}]
  %s5 = sld [smem:[#allocation0]]
  $region61: #{tpu_custom_call.1} parent=0
    _
  %s7 = ssub.s32 1, %s5
  %s8 = scalar_select 0, %s7, %s5
  loop: start=0, step=1, limit=4
  $region2: #{tpu_custom_call.1} parent=0 // loop_pre_header
    _
  $region3: #{tpu_custom_call.1} parent=0 // loop_header
    %s10 = sphi 0, %s14
    %p11 = scmp.ge.s32.totalorder %s10, 4
    %s17 = sphi 0, %s36
    %s18 = sphi 0, %s32
    %s19 = sphi 0, %s28
    %s20 = sphi 0, %s17
    %s21 = sphi 0, %s18
    %s22 = sphi 0, %s19
    %s23 = sphi 0, %s20
    %s24 = sphi 0, %s21
    %s25 = sphi 0, %s22
    %s41 = sphi 0, %s43
    %s44 = sphi 0, %s41
    %s45 = sphi 0, %s44
    %s61 = sphi 0, %s45
    %s69 = sphi 0, %s71
    %s72 = sphi 0, %s69
    %s73 = sphi 0, %s72
    %s89 = sphi 0, %s73
    %s97 = sphi 0, %s99
    %s100 = sphi 0, %s97
    %s101 = sphi 0, %s100
    %s117 = sphi 0, %s101
    %s125 = sphi 0, %s127
    %s128 = sphi 0, %s125
    %s129 = sphi 0, %s128
    %s145 = sphi 0, %s129
    %s151 = sphi 0, %s153
    %s154 = sphi 0, %s151
    %s155 = sphi 0, %s154
    %s171 = sphi 0, %s155
  $region4: #{tpu_custom_call.1} parent=0 // loop_header_branch
    %13 = sbr.rel (%p11) target = $region8
  $region5: #{tpu_custom_call.1} parent=0 // loop_body
    %s15 = ssub.s32 %s10, 1
    %s16 = ssub.s32 %s10, 2
    %s26 = sadd.s32 1, %s19
    %p27 = scmp.ge.s32.totalorder %s26, 1
    %s28 = scalar_select %p27, 0, %s26
    %s29 = sadd.s32 1, %s18
    %s30 = scalar_select %p27, %s29, %s18
    %p31 = scmp.ge.s32.totalorder %s30, 1
    %s32 = scalar_select %p31, 0, %s30
    %s33 = sadd.s32 1, %s17
    %s34 = scalar_select %p31, %s33, %s17
    %p35 = scmp.ge.s32.totalorder %s34, 2
    %s36 = scalar_select %p35, 0, %s34
    %s37 = ssub.s32 %s17, %s36
    %s38 = ssub.s32 %s18, %s32
    %s39 = sor.u32 %s37, %s38
    %p40 = scmp.eq.s32.totalorder %s39, 0
    %s42 = sadd.s32 %s41, 1
    %s43 = scalar_select %p40, %s41, %s42
    %p46 = pneg %p40
    %p47 = scmp.eq.s32.totalorder %s10, 1
    %p48 = por %p46, %p47
    %p49 = scmp.ne.s32.totalorder %s41, %s44
    %p50 = scmp.eq.s32.totalorder %s10, 0
    %p51 = por %p49, %p50
    %p52 = scmp.ne.s32.totalorder %s41, %s44
    %p53 = scmp.eq.s32.totalorder %s15, 1
    %p54 = por %p52, %p53
    %p55 = scmp.ne.s32.totalorder %s44, %s45
    %p56 = scmp.eq.s32.totalorder %s15, 0
    %p57 = por %p55, %p56
    %p58 = scmp.ne.s32.totalorder %s44, %s45
    %p59 = scmp.eq.s32.totalorder %s16, 1
    %p60 = por %p58, %p59
    %p62 = scmp.ne.s32.totalorder %s45, %s61
    %p63 = scmp.eq.s32.totalorder %s16, 0
    %p64 = por %p62, %p63
    %s65 = ssub.s32 %s17, %s36
    %s66 = ssub.s32 %s19, %s28
    %s67 = sor.u32 %s65, %s66
    %p68 = scmp.eq.s32.totalorder %s67, 0
    %s70 = sadd.s32 %s69, 1
    %s71 = scalar_select %p68, %s69, %s70
    %p74 = pneg %p68
    %p75 = scmp.eq.s32.totalorder %s10, 1
    %p76 = por %p74, %p75
    %p77 = scmp.ne.s32.totalorder %s69, %s72
    %p78 = scmp.eq.s32.totalorder %s10, 0
    %p79 = por %p77, %p78
    %p80 = scmp.ne.s32.totalorder %s69, %s72
    %p81 = scmp.eq.s32.totalorder %s15, 1
    %p82 = por %p80, %p81
    %p83 = scmp.ne.s32.totalorder %s72, %s73
    %p84 = scmp.eq.s32.totalorder %s15, 0
    %p85 = por %p83, %p84
    %p86 = scmp.ne.s32.totalorder %s72, %s73
    %p87 = scmp.eq.s32.totalorder %s16, 1
    %p88 = por %p86, %p87
    %p90 = scmp.ne.s32.totalorder %s73, %s89
    %p91 = scmp.eq.s32.totalorder %s16, 0
    %p92 = por %p90, %p91
    %s93 = ssub.s32 %s17, %s36
    %s94 = ssub.s32 %s18, %s32
    %s95 = sor.u32 %s93, %s94
    %p96 = scmp.eq.s32.totalorder %s95, 0
    %s98 = sadd.s32 %s97, 1
    %s99 = scalar_select %p96, %s97, %s98
    %p102 = pneg %p96
    %p103 = scmp.eq.s32.totalorder %s10, 1
    %p104 = por %p102, %p103
    %p105 = scmp.ne.s32.totalorder %s97, %s100
    %p106 = scmp.eq.s32.totalorder %s10, 0
    %p107 = por %p105, %p106
    %p108 = scmp.ne.s32.totalorder %s97, %s100
    %p109 = scmp.eq.s32.totalorder %s15, 1
    %p110 = por %p108, %p109
    %p111 = scmp.ne.s32.totalorder %s100, %s101
    %p112 = scmp.eq.s32.totalorder %s15, 0
    %p113 = por %p111, %p112
    %p114 = scmp.ne.s32.totalorder %s100, %s101
    %p115 = scmp.eq.s32.totalorder %s16, 1
    %p116 = por %p114, %p115
    %p118 = scmp.ne.s32.totalorder %s101, %s117
    %p119 = scmp.eq.s32.totalorder %s16, 0
    %p120 = por %p118, %p119
    %s121 = ssub.s32 %s17, %s36
    %s122 = ssub.s32 %s19, %s28
    %s123 = sor.u32 %s121, %s122
    %p124 = scmp.eq.s32.totalorder %s123, 0
    %s126 = sadd.s32 %s125, 1
    %s127 = scalar_select %p124, %s125, %s126
    %p130 = pneg %p124
    %p131 = scmp.eq.s32.totalorder %s10, 1
    %p132 = por %p130, %p131
    %p133 = scmp.ne.s32.totalorder %s125, %s128
    %p134 = scmp.eq.s32.totalorder %s10, 0
    %p135 = por %p133, %p134
    %p136 = scmp.ne.s32.totalorder %s125, %s128
    %p137 = scmp.eq.s32.totalorder %s15, 1
    %p138 = por %p136, %p137
    %p139 = scmp.ne.s32.totalorder %s128, %s129
    %p140 = scmp.eq.s32.totalorder %s15, 0
    %p141 = por %p139, %p140
    %p142 = scmp.ne.s32.totalorder %s128, %s129
    %p143 = scmp.eq.s32.totalorder %s16, 1
    %p144 = por %p142, %p143
    %p146 = scmp.ne.s32.totalorder %s129, %s145
    %p147 = scmp.eq.s32.totalorder %s16, 0
    %p148 = por %p146, %p147
    %s149 = ssub.s32 %s17, %s36
    %p150 = scmp.eq.s32.totalorder %s149, 0
    %s152 = sadd.s32 %s151, 1
    %s153 = scalar_select %p150, %s151, %s152
    %p156 = pneg %p150
    %p157 = scmp.eq.s32.totalorder %s10, 1
    %p158 = por %p156, %p157
    %p159 = scmp.ne.s32.totalorder %s151, %s154
    %p160 = scmp.eq.s32.totalorder %s10, 0
    %p161 = por %p159, %p160
    %p162 = scmp.ne.s32.totalorder %s151, %s154
    %p163 = scmp.eq.s32.totalorder %s15, 1
    %p164 = por %p162, %p163
    %p165 = scmp.ne.s32.totalorder %s154, %s155
    %p166 = scmp.eq.s32.totalorder %s15, 0
    %p167 = por %p165, %p166
    %p168 = scmp.ne.s32.totalorder %s154, %s155
    %p169 = scmp.eq.s32.totalorder %s16, 1
    %p170 = por %p168, %p169
    %p172 = scmp.ne.s32.totalorder %s155, %s171
    %p173 = scmp.eq.s32.totalorder %s16, 0
    %p174 = por %p172, %p173
    %p175 = scmp.le.s32.totalorder 1, %s10
    %p176 = scmp.lt.s32.totalorder %s10, 3
    %p177 = pnand %p175, %p176
    %p178 = pneg %p177
    // Predicated region
    $region9: #{tpu_custom_call.1} parent=5 // pred_check
      _
    $region10: #{tpu_custom_call.1} parent=5 // pred_check_branch
      %180 = sbr.rel (%p177) target = $region12
    $region11: #{tpu_custom_call.1} parent=5 // pred_region
      %s181 = ssub.s32 %s10, 1
    $region12: #{tpu_custom_call.1} parent=5 // pred_fallthru
      _
    %p182 = scmp.lt.s32.totalorder %s10, 2
    // Predicated region
    $region13: #{tpu_custom_call.1} parent=5 // pred_check
      %p183 = pneg %p182
    $region14: #{tpu_custom_call.1} parent=5 // pred_check_branch
      %185 = sbr.rel (%p183) target = $region16
    $region15: #{tpu_custom_call.1} parent=5 // pred_region
      // Predicated region
      $region17: #{tpu_custom_call.1} parent=15 // pred_check
        %p186 = pneg %p51
      $region18: #{tpu_custom_call.1} parent=15 // pred_check_branch
        %188 = sbr.rel (%p186) target = $region20
      $region19: #{tpu_custom_call.1} parent=15 // pred_region
        %p189 = scmp.lt.s32.totalorder %s17, 1
        %s190 = scalar_select %p189, %s17, 1
        %p191 = scmp.lt.s32.totalorder %s18, 0
        %s192 = scalar_select %p191, %s18, 0
        %s193 = sadd.s32 %s192, %s190
        %s194 = smul.addr %s193, 8
        %s195 = scalar_lea.vmem %s0, %s194
      $region20: #{tpu_custom_call.1} parent=15 // pred_fallthru
        _
      // Predicated region
      $region21: #{tpu_custom_call.1} parent=15 // pred_check
        %p196 = pneg %p79
      $region22: #{tpu_custom_call.1} parent=15 // pred_check_branch
        %198 = sbr.rel (%p196) target = $region24
      $region23: #{tpu_custom_call.1} parent=15 // pred_region
        %p199 = scmp.lt.s32.totalorder %s17, 1
        %s200 = scalar_select %p199, %s17, 1
        %p201 = scmp.lt.s32.totalorder %s19, 0
        %s202 = scalar_select %p201, %s19, 0
        %s203 = sadd.s32 %s202, %s200
        %s204 = smul.addr %s203, 8
        %s205 = scalar_lea.vmem %s1, %s204
      $region24: #{tpu_custom_call.1} parent=15 // pred_fallthru
        _
      // Predicated region
      $region25: #{tpu_custom_call.1} parent=15 // pred_check
        %p206 = pneg %p107
      $region26: #{tpu_custom_call.1} parent=15 // pred_check_branch
        %208 = sbr.rel (%p206) target = $region28
      $region27: #{tpu_custom_call.1} parent=15 // pred_region
        %p209 = scmp.lt.s32.totalorder %s17, 1
        %s210 = scalar_select %p209, %s17, 1
        %p211 = scmp.lt.s32.totalorder %s18, 0
        %s212 = scalar_select %p211, %s18, 0
        %s213 = sadd.s32 %s212, %s210
        %s214 = smul.addr %s213, 8
        %s215 = scalar_lea.vmem %s2, %s214
      $region28: #{tpu_custom_call.1} parent=15 // pred_fallthru
        _
      // Predicated region
      $region29: #{tpu_custom_call.1} parent=15 // pred_check
        %p216 = pneg %p135
      $region30: #{tpu_custom_call.1} parent=15 // pred_check_branch
        %218 = sbr.rel (%p216) target = $region32
      $region31: #{tpu_custom_call.1} parent=15 // pred_region
        %p219 = scmp.lt.s32.totalorder %s17, 1
        %s220 = scalar_select %p219, %s17, 1
        %p221 = scmp.lt.s32.totalorder %s19, 0
        %s222 = scalar_select %p221, %s19, 0
        %s223 = sadd.s32 %s222, %s220
        %s224 = smul.addr %s223, 8
        %s225 = scalar_lea.vmem %s3, %s224
      $region32: #{tpu_custom_call.1} parent=15 // pred_fallthru
        _
    $region16: #{tpu_custom_call.1} parent=5 // pred_fallthru
      _
    %p226 = scmp.le.s32.totalorder 1, %s10
    %p227 = scmp.lt.s32.totalorder %s10, 3
    %p228 = pnand %p226, %p227
    %p229 = pneg %p228
    // Predicated region
    $region33: #{tpu_custom_call.1} parent=5 // pred_check
      _
    $region34: #{tpu_custom_call.1} parent=5 // pred_check_branch
      %231 = sbr.rel (%p228) target = $region36
    $region35: #{tpu_custom_call.1} parent=5 // pred_region
      %s232 = ssub.s32 %s10, 1
      %p233 = scmp.lt.s32.totalorder %s20, 1
      %s234 = scalar_select %p233, %s20, 1
      %p235 = scmp.lt.s32.totalorder %s21, 0
      %s236 = scalar_select %p235, %s21, 0
      %s237 = sadd.s32 %s236, %s234
      %s238 = smul.addr %s237, 8
      %s239 = scalar_lea.vmem %s0, %s238
      %p240 = pneg %p57
      %p241 = pneg %p54
      %p242 = scmp.lt.s32.totalorder %s20, 1
      %s243 = scalar_select %p242, %s20, 1
      %p244 = scmp.lt.s32.totalorder %s22, 0
      %s245 = scalar_select %p244, %s22, 0
      %s246 = sadd.s32 %s245, %s243
      %s247 = smul.addr %s246, 8
      %s248 = scalar_lea.vmem %s1, %s247
      %p249 = pneg %p85
      %p250 = pneg %p82
      %p251 = scmp.lt.s32.totalorder %s20, 1
      %s252 = scalar_select %p251, %s20, 1
      %p253 = scmp.lt.s32.totalorder %s21, 0
      %s254 = scalar_select %p253, %s21, 0
      %s255 = sadd.s32 %s254, %s252
      %s256 = smul.addr %s255, 8
      %s257 = scalar_lea.vmem %s2, %s256
      %p258 = pneg %p113
      %p259 = pneg %p110
      %p260 = scmp.lt.s32.totalorder %s20, 1
      %s261 = scalar_select %p260, %s20, 1
      %p262 = scmp.lt.s32.totalorder %s22, 0
      %s263 = scalar_select %p262, %s22, 0
      %s264 = sadd.s32 %s263, %s261
      %s265 = smul.addr %s264, 8
      %s266 = scalar_lea.vmem %s3, %s265
      %p267 = pneg %p141
      %p268 = pneg %p138
      %p269 = pneg %p167
      %p270 = pneg %p164
      %p271 = scmp.lt.s32.totalorder %s20, 1
      %s272 = scalar_select %p271, %s20, 1
      %s273 = scalar_lea.vmem %s4, %s272
      %p274 = scmp.lt.s32.totalorder %s20, 1
      %s275 = scalar_select %p274, %s20, 1
      %p276 = scmp.lt.s32.totalorder %s21, 0
      %s277 = scalar_select %p276, %s21, 0
      %s278 = sadd.s32 %s277, %s275
      %s279 = smul.addr %s278, 8
      %s280 = scalar_lea.vmem %s0, %s279
      %p281 = scmp.lt.s32.totalorder %s20, 1
      %s282 = scalar_select %p281, %s20, 1
      %p283 = scmp.lt.s32.totalorder %s22, 0
      %s284 = scalar_select %p283, %s22, 0
      %s285 = sadd.s32 %s284, %s282
      %s286 = smul.addr %s285, 8
      %s287 = scalar_lea.vmem %s1, %s286
      %p288 = scmp.lt.s32.totalorder %s20, 1
      %s289 = scalar_select %p288, %s20, 1
      %p290 = scmp.lt.s32.totalorder %s21, 0
      %s291 = scalar_select %p290, %s21, 0
      %s292 = sadd.s32 %s291, %s289
      %s293 = smul.addr %s292, 8
      %s294 = scalar_lea.vmem %s2, %s293
      %p295 = scmp.lt.s32.totalorder %s20, 1
      %s296 = scalar_select %p295, %s20, 1
      %p297 = scmp.lt.s32.totalorder %s22, 0
      %s298 = scalar_select %p297, %s22, 0
      %s299 = sadd.s32 %s298, %s296
      %s300 = smul.addr %s299, 8
      %s301 = scalar_lea.vmem %s3, %s300
      %p302 = scmp.lt.s32.totalorder %s20, 1
      %s303 = scalar_select %p302, %s20, 1
      %s304 = scalar_lea.vmem %s4, %s303
      %p306 = scmp.eq.s32.totalorder %s21, 0
      %p307 = scmp.eq.s32.totalorder %s22, 0
      %p308 = pnand %p306, %p307
      %p309 = pneg %p308
      // Predicated region
      $region37: #{tpu_custom_call.1} parent=35 // pred_check
        _
      $region38: #{tpu_custom_call.1} parent=35 // pred_check_branch
        %311 = sbr.rel (%p308) target = $region40
      $region39: #{tpu_custom_call.1} parent=35 // pred_region
        %vm312 = vcmask 64512
        %313 = vst.msk [vmem:[#allocation2] sm:$0xff] %vm312, 0.0
        %vm314 = vcmask 7168
        %315 = vst.msk [vmem:[#allocation3] sm:$0xff] %vm314, 0.0
      $region40: #{tpu_custom_call.1} parent=35 // pred_fallthru
        _
      %v316 = vld [vmem:[%s280] sm:$0xff]
      %v317 = vld [vmem:[%s287] sm:$0xff]
      %v318 = vld [vmem:[%s294] sm:$0xff]
      %v319 = vld [vmem:[%s301] sm:$0xff]
      %v320 = vmul.f32 %v316, %v316
      %vm321 = vcmask 261120
      %v322 = vsel %vm321, %v320, 0.0
      %323 = vadd.xlane.f32.xlu0 %v322
      %v324 = vpop.xlane.xlu0 %323
      %v325 = vrsqrt.pop %v324
      %v326 = vmul.f32 %v324, %v325
      %vm327 = vcmp.eq.f32.partialorder %v324, inf
      %v328 = vsel %vm327, %v324, %v326
      %vm329 = vcmp.eq.f32.partialorder %v324, 0.0
      %v330 = vand.u32 %v324, 2147483648
      %v331 = vsel %vm329, %v330, %v328
      %v332 = vmax.f32 %v331, 1e-12
      %v333 = vrcp.pop %v332
      %v334 = vmul.f32 %v318, %v333
      %336 = vset.pattern.permute.xlu0 0
      %337 = vperm.xlu0 %336, %v334
      %v338 = vpop.permute.xlu0 %337
      %v340 = vmul.f32 %v316, %v338
      %v341 = vmul.f32 %v317, %v317
      %v342 = vsel %vm321, %v341, 0.0
      %343 = vadd.xlane.f32.xlu0 %v342
      %v344 = vpop.xlane.xlu0 %343
      %v345 = vrsqrt.pop %v344
      %v346 = vmul.f32 %v344, %v345
      %vm347 = vcmp.eq.f32.partialorder %v344, inf
      %v348 = vsel %vm347, %v344, %v346
      %vm349 = vcmp.eq.f32.partialorder %v344, 0.0
      %v350 = vand.u32 %v344, 2147483648
      %v351 = vsel %vm349, %v350, %v348
      %v352 = vmax.f32 %v351, 1e-12
      %v353 = vrcp.pop %v352
      %v354 = vmul.f32 %v319, %v353
      %356 = vset.pattern.permute.xlu0 0
      %357 = vperm.xlu0 %356, %v354
      %v358 = vpop.permute.xlu0 %357
      %v360 = vmul.f32 %v317, %v358
      %v361 = vpack.c.bf16 %v340, %v340
      %v362 = vpack.c.bf16 %v360, %v360
      %v364 = vsel %vm321, %v361, 0
      %v367 = vsel %vm321, %v362, 0
      %369 = vmatprep.subr.bf16.mxu0 0
      %370 = vmatpush1.bf16.xpose.msra.mxu0 %v367
      %371 = vmatprep.subr.bf16.mxu0 0
      %372 = vmatpush1.bf16.xpose.msra.mxu0 0
      %373 = vmatprep.subr.bf16.mxu0 0
      %374 = vmatpush1.bf16.xpose.msra.mxu0 0
      %375 = vmatprep.subr.bf16.mxu0 0
      %376 = vmatpush1.bf16.xpose.msra.mxu0 0
      %377 = vmatprep.subr.bf16.mxu0 0
      %378 = vmatpush1.bf16.xpose.msra.mxu0 0
      %379 = vmatprep.subr.bf16.mxu0 0
      %380 = vmatpush1.bf16.xpose.msra.mxu0 0
      %381 = vmatprep.subr.bf16.mxu0 0
      %382 = vmatpush1.bf16.xpose.msra.mxu0 0
      %383 = vmatprep.subr.bf16.mxu0 0
      %384 = vmatpush1.bf16.xpose.msra.mxu0 0
      %385 = vmatprep.subr.bf16.mxu0 0
      %386 = vmatpush1.bf16.xpose.msra.mxu0 0
      %387 = vmatprep.subr.bf16.mxu0 0
      %388 = vmatpush1.bf16.xpose.msra.mxu0 0
      %389 = vmatprep.subr.bf16.mxu0 0
      %390 = vmatpush1.bf16.xpose.msra.mxu0 0
      %391 = vmatprep.subr.bf16.mxu0 0
      %392 = vmatpush1.bf16.xpose.msra.mxu0 0
      %393 = vmatprep.subr.bf16.mxu0 0
      %394 = vmatpush1.bf16.xpose.msra.mxu0 0
      %395 = vmatprep.subr.bf16.mxu0 0
      %396 = vmatpush1.bf16.xpose.msra.mxu0 0
      %397 = vmatprep.subr.bf16.mxu0 0
      %398 = vmatpush1.bf16.xpose.msra.mxu0 0
      %399 = vmatprep.subr.bf16.mxu0 0
      %400 = vmatpush1.bf16.xpose.msra.mxu0 0
      %401 = vmatprep.mubr.bf16.mxu0 0
      %402 = vmatmul.mubr.bf16.gmra.mrb[0].mxu0 %v364
      %v403 = vpop.f32.mrb[0].mxu0
      %v404 = vadd.f32 0.0, %v403
      %v405 = vpop.f32.mrb[0].mxu0
      %v406 = vpop.f32.mrb[0].mxu0
      %v407 = vpop.f32.mrb[0].mxu0
      %408 = vdwg.mxu0
      %v409 = vld [vmem:[#allocation2] sm:$0xff]
      %v410 = vmul.f32 %v404, %v404
      %v411 = vadd.f32 %v409, %v410
      %vm412 = vcmask 64512
      %413 = vst.msk [vmem:[#allocation2] sm:$0xff] %vm412, %v411
      %p414 = scmp.eq.s32.totalorder %s21, %s22
      // Predicated region
      $region41: #{tpu_custom_call.1} parent=35 // pred_check
        %p415 = pneg %p414
      $region42: #{tpu_custom_call.1} parent=35 // pred_check_branch
        %417 = sbr.rel (%p415) target = $region44
      $region43: #{tpu_custom_call.1} parent=35 // pred_region
        %v418 = vunpack.c.l.bf16 %v361
        %v419 = vmul.f32 %v418, %v418
        %v420 = vsel %vm321, %v419, 0.0
        %421 = vadd.xlane.f32.xlu0 %v420
        %v422 = vpop.xlane.xlu0 %421
        %v423 = vmul.f32 %v318, %v318
        %v424 = vld [vmem:[#allocation3] sm:$0xff]
        %v425 = vmul.f32 %v423, %v423
        %v426 = vmul.f32 %v422, 2.0
        %v427 = vmul.f32 %v426, %v423
        %v428 = vsub.f32 %v425, %v427
        %v429 = vadd.f32 %v424, %v428
        %vm430 = vcmask 7168
        %431 = vst.msk [vmem:[#allocation3] sm:$0xff] %vm430, %v429
      $region44: #{tpu_custom_call.1} parent=35 // pred_fallthru
        _
      // Predicated region
      $region45: #{tpu_custom_call.1} parent=35 // pred_check
        _
      $region46: #{tpu_custom_call.1} parent=35 // pred_check_branch
        %433 = sbr.rel (%p308) target = $region48
      $region47: #{tpu_custom_call.1} parent=35 // pred_region
        %v434 = vld [vmem:[#allocation2] sm:$0xff]
        %v435 = vsel %vm412, %v434, 0.0
        %436 = vadd.xlane.f32.xlu0 %v435
        %v437 = vpop.xlane.xlu0 %436
        %v438 = vrot.slane %v437, 4
        %v439 = vadd.f32 %v437, %v438
        %v440 = vrot.slane %v439, 2
        %v441 = vadd.f32 %v439, %v440
        %v442 = vrot.slane %v441, 1
        %v443 = vadd.f32 %v441, %v442
        %s444 = vtos %v443
        %v445 = vld [vmem:[#allocation3] sm:$0xff]
        %vm446 = vcmask 7168
        %v447 = vsel %vm446, %v445, 0.0
        %448 = vadd.xlane.f32.xlu0 %v447
        %v449 = vpop.xlane.xlu0 %448
        %v450 = vrot.slane %v449, 4
        %v451 = vadd.f32 %v449, %v450
        %v452 = vrot.slane %v451, 2
        %v453 = vadd.f32 %v451, %v452
        %v454 = vrot.slane %v453, 1
        %v455 = vadd.f32 %v453, %v454
        %s456 = vtos %v455
        %s457 = sadd.f32 %s444, %s456
        %v458 = vstv %s457
        %vm459 = vcmask 0
        %460 = vst.msk [vmem:[%s304] sm:$0x1] %vm459, %v458
      $region48: #{tpu_custom_call.1} parent=35 // pred_fallthru
        _
      %p461 = scmp.lt.s32.totalorder %s20, 1
      %s462 = scalar_select %p461, %s20, 1
      %s463 = scalar_lea.vmem %s4, %s462
      // Predicated region
      $region49: #{tpu_custom_call.1} parent=35 // pred_check
        %p464 = pneg %p164
      $region50: #{tpu_custom_call.1} parent=35 // pred_check_branch
        %466 = sbr.rel (%p464) target = $region52
      $region51: #{tpu_custom_call.1} parent=35 // pred_region
        _
      $region52: #{tpu_custom_call.1} parent=35 // pred_fallthru
        _
    $region36: #{tpu_custom_call.1} parent=5 // pred_fallthru
      _
    %p467 = scmp.le.s32.totalorder 2, %s10
    // Predicated region
    $region53: #{tpu_custom_call.1} parent=5 // pred_check
      %p468 = pneg %p467
    $region54: #{tpu_custom_call.1} parent=5 // pred_check_branch
      %470 = sbr.rel (%p468) target = $region56
    $region55: #{tpu_custom_call.1} parent=5 // pred_region
      %s471 = ssub.s32 %s10, 2
      // Predicated region
      $region57: #{tpu_custom_call.1} parent=55 // pred_check
        %p472 = pneg %p170
      $region58: #{tpu_custom_call.1} parent=55 // pred_check_branch
        %474 = sbr.rel (%p472) target = $region60
      $region59: #{tpu_custom_call.1} parent=55 // pred_region
        %p475 = scmp.lt.s32.totalorder %s23, 1
        %s476 = scalar_select %p475, %s23, 1
        %s477 = scalar_lea.vmem %s4, %s476
      $region60: #{tpu_custom_call.1} parent=55 // pred_fallthru
        _
    $region56: #{tpu_custom_call.1} parent=5 // pred_fallthru
      _
  $region6: #{tpu_custom_call.1} parent=0 // loop_footer
    %s14 = sadd.s32 1, %s10
  $region7: #{tpu_custom_call.1} parent=0 // loop_footer_branch
    %9 = sbr.rel target = $region3
  $region8: #{tpu_custom_call.1} parent=0 // loop_exit
    _

</llo_original>
